<compile_context>
chip_gen: v7x
topology: tpu7x:2x2x1
jax: 0.10.0
libtpu: 0.0.40
codegen_flags: <defaults>
</compile_context>

<pallas_src>
import jax
import jax.numpy as jnp
from jax.experimental import pallas as pl
from jax.experimental.pallas import tpu as pltpu


def _mapper_block_kernel(x_ref, w_ref, b_ref, o_ref):
    # x_ref: (C_in, TL)   w_ref: (C_out, C_in)   b_ref: (C_out, 1) f32
    # o_ref: (C_out, TL)
    # 1x1 Conv1d over channels (BN already folded into w/b) == channel matmul
    # on the MXU with f32 accumulation; bias broadcast over L on the VPU.
    y = jnp.dot(w_ref[...], x_ref[...], preferred_element_type=jnp.float32)
    o_ref[...] = (y + b_ref[...]).astype(o_ref.dtype)
    # TODO(synk): Dropout(0.1) is identity at inference; training-mode masking
    # (pltpu.prng_* stochastic mask) and BN batch-statistics are not implemented.


def _vmem_budget_bytes():
    """Generation-aware VMEM budget for block accounting (<= half physical)."""
    cap = 64 * 1024 * 1024                      # conservative fallback (v7x physical)
    try:
        info = pltpu.get_tpu_info()
        cap = int(getattr(info, "vmem_capacity_bytes", cap))
    except Exception:
        pass
    # Half of physical VMEM, capped at 48 MiB (v5e/v6e: 128 MiB phys -> 48 MiB,
    # v7x: 64 MiB phys -> 32 MiB). Leaves plenty of room for compiler scratch.
    return int(min(cap // 2, 48 * 1024 * 1024))


def _choose_tl(L, c_in, c_out, itemsize, budget):
    """Largest lane-aligned L-tile whose double-buffered blocks fit the budget."""
    # Resident (but still double-buffered by BlockSpec) weight + bias blocks.
    fixed = 2 * c_out * c_in * itemsize + 2 * c_out * 4
    avail = max(0, budget - fixed - (2 << 20))      # 2 MiB headroom for scratch
    per_lane = 2 * (c_in + c_out) * itemsize        # x + out, double-buffered
    cap = max(128, min(32768, (avail // per_lane) // 128 * 128))
    # If the whole length fits in one tile, take it (block dim == array dim is
    # always legal, even when L is not a multiple of 128).
    return L if L <= cap else cap


def mapper_block(x, gamma, beta, running_mean, running_var, w, b, *,
                 eps=1e-5, tl=None):
    """Inference-mode MapperBlock: Dropout(Conv1d_1x1(BatchNorm1d(x)))."""
    B, C_in, L = x.shape
    C_out, C_in_w = w.shape
    assert C_in_w == C_in
    assert gamma.shape == beta.shape == running_mean.shape == running_var.shape == (C_in,)
    assert b.shape == (C_out,)

    # ---- Fold BN (inference running stats) fully into the conv weights -----
    # BN:  xn = (x - mean) * gamma / sqrt(var + eps) + beta = scale*x + shift
    # Conv1d(k=1): y = W @ xn + b = (W * scale) @ x + (W @ shift + b)
    inv_std = 1.0 / jnp.sqrt(running_var.astype(jnp.float32) + eps)
    g32 = gamma.astype(jnp.float32)
    scale = g32 * inv_std                                    # (C_in,)
    shift = beta.astype(jnp.float32) - running_mean.astype(jnp.float32) * scale
    w32 = w.astype(jnp.float32)
    w_folded = (w32 * scale[None, :]).astype(w.dtype)        # (C_out, C_in)
    b_folded = (w32 @ shift + b.astype(jnp.float32)).reshape(C_out, 1)  # f32

    itemsize = x.dtype.itemsize
    budget = _vmem_budget_bytes()
    if tl is None:
        tl = _choose_tl(L, C_in, C_out, itemsize, budget)
    # Keep >= 2 grid steps when cheap to do so (v7x megacore sharding).
    if B * ((L + tl - 1) // tl) < 2 and L > 256:
        tl = ((((L + 1) // 2) + 127) // 128) * 128           # round_up(ceil(L/2), 128)
    grid = (B, pl.cdiv(L, tl))

    cost = pl.CostEstimate(
        flops=2 * B * C_out * C_in * L + B * C_out * L,
        transcendentals=0,
        bytes_accessed=B * (C_in + C_out) * L * itemsize
        + C_out * C_in * itemsize + C_out * 4,
    )

    # Explicit VMEM limit matched to the block accounting used in _choose_tl.
    vmem_limit = int(budget)

    return pl.pallas_call(
        _mapper_block_kernel,
        out_shape=jax.ShapeDtypeStruct((B, C_out, L), x.dtype),
        grid_spec=pltpu.PrefetchScalarGridSpec(
            num_scalar_prefetch=0,
            grid=grid,
            in_specs=[
                # per-(batch, L-tile) slab of x; batch dim squeezed away
                pl.BlockSpec((pl.Squeezed(), C_in, tl), lambda bi, li: (bi, 0, li)),
                pl.BlockSpec((C_out, C_in), lambda bi, li: (0, 0)),  # folded weight
                pl.BlockSpec((C_out, 1), lambda bi, li: (0, 0)),     # folded bias
            ],
            out_specs=pl.BlockSpec((pl.Squeezed(), C_out, tl),
                                   lambda bi, li: (bi, 0, li)),
        ),
        compiler_params=pltpu.CompilerParams(
            dimension_semantics=("parallel", "parallel"),
            vmem_limit_bytes=vmem_limit,
        ),
        cost_estimate=cost,
    )(x, w_folded, b_folded)


def _reference(x, gamma, beta, running_mean, running_var, w, b, eps=1e-5):
    inv = 1.0 / jnp.sqrt(running_var[None, :, None] + eps)
    xn = (x - running_mean[None, :, None]) * inv * gamma[None, :, None] + beta[None, :, None]
    y = jnp.einsum("oc,bcl->bol", w, xn) + b[None, :, None]
    return y  # Dropout(0.1) is identity at inference


if __name__ == "__main__":
    B, C_in, C_out, L = 2, 8, 16, 512
    key = jax.random.PRNGKey(0)
    kx, kg, kb, km, kv, kw, kc = jax.random.split(key, 7)

    x = jax.random.normal(kx, (B, C_in, L), dtype=jnp.float32)
    gamma = 1.0 + 0.1 * jax.random.normal(kg, (C_in,), dtype=jnp.float32)
    beta = 0.1 * jax.random.normal(kb, (C_in,), dtype=jnp.float32)
    running_mean = 0.1 * jax.random.normal(km, (C_in,), dtype=jnp.float32)
    running_var = jnp.abs(1.0 + 0.1 * jax.random.normal(kv, (C_in,), dtype=jnp.float32))
    w = 0.1 * jax.random.normal(kw, (C_out, C_in), dtype=jnp.float32)   # Conv1d k=1 weight
    b = 0.1 * jax.random.normal(kc, (C_out,), dtype=jnp.float32)

    ref = _reference(x, gamma, beta, running_mean, running_var, w, b)

    # Auto tile (single fat slab per batch at these small shapes).
    out = jax.block_until_ready(
        mapper_block(x, gamma, beta, running_mean, running_var, w, b))
    assert out.shape == (B, C_out, L)
    assert jnp.allclose(out, ref, atol=1e-5, rtol=1e-5), "mismatch vs reference (auto tl)"

    # Explicit tl=128 exercises the L-tiled path (grid = (2, 4)).
    out_tiled = jax.block_until_ready(
        mapper_block(x, gamma, beta, running_mean, running_var, w, b, tl=128))
    assert jnp.allclose(out_tiled, ref, atol=1e-5, rtol=1e-5), "mismatch vs reference (tl=128)"

    print("KERNEL_OK")
</pallas_src>

<mosaic_0001>
module attributes {stable_mosaic.version = 11 : i64} {
  func.func @_mapper_block_kernel(%arg0: i32, %arg1: i32, %arg2: memref<1x8x512xf32, #tpu.memory_space<vmem>>, %arg3: memref<16x8xf32, #tpu.memory_space<vmem>>, %arg4: memref<16x1xf32, #tpu.memory_space<vmem>>, %arg5: memref<1x16x512xf32, #tpu.memory_space<vmem>>) attributes {dimension_semantics = [#tpu.dimension_semantics<parallel>, #tpu.dimension_semantics<parallel>], iteration_bounds = array<i64: 2, 1>, scalar_prefetch = 0 : i64, scratch_operands = 0 : i64, tpu.core_type = #tpu.core_type<tc>, window_params = [{transform_indices = @transform_0, window_bounds = array<i64: 1, 8, 512>}, {pipeline_mode = #tpu.pipeline_mode<synchronous>, transform_indices = @transform_1, window_bounds = array<i64: 16, 8>}, {pipeline_mode = #tpu.pipeline_mode<synchronous>, transform_indices = @transform_2, window_bounds = array<i64: 16, 1>}, {transform_indices = @transform_3, window_bounds = array<i64: 1, 16, 512>}]} {
    %c0 = arith.constant 0 : index
    %c0_0 = arith.constant 0 : index
    %0 = vector.load %arg3[%c0, %c0_0] : memref<16x8xf32, #tpu.memory_space<vmem>>, vector<16x8xf32>
    %c0_1 = arith.constant 0 : index
    %c0_2 = arith.constant 0 : index
    %c0_3 = arith.constant 0 : index
    %1 = vector.load %arg2[%c0_1, %c0_2, %c0_3] : memref<1x8x512xf32, #tpu.memory_space<vmem>>, vector<1x8x512xf32>
    %2 = vector.shape_cast %1 : vector<1x8x512xf32> to vector<8x512xf32>
    %cst = arith.constant dense<0.000000e+00> : vector<16x512xf32>
    %3 = tpu.matmul %0, %2, %cst {dimension_numbers = #tpu.dot_dimension_numbers<[1], [0], [0], [1], [0, 0, 1, 1], [], []>} : vector<16x8xf32>, vector<8x512xf32>, vector<16x512xf32> -> vector<16x512xf32>
    %c0_4 = arith.constant 0 : index
    %c0_5 = arith.constant 0 : index
    %4 = vector.load %arg4[%c0_4, %c0_5] : memref<16x1xf32, #tpu.memory_space<vmem>>, vector<16x1xf32>
    %5 = vector.broadcast %4 : vector<16x1xf32> to vector<16x512xf32>
    %6 = arith.addf %3, %5 : vector<16x512xf32>
    %c0_6 = arith.constant 0 : index
    %c0_7 = arith.constant 0 : index
    %c0_8 = arith.constant 0 : index
    %7 = vector.load %arg5[%c0_6, %c0_7, %c0_8] : memref<1x16x512xf32, #tpu.memory_space<vmem>>, vector<1x16x512xf32>
    %8 = vector.shape_cast %7 : vector<1x16x512xf32> to vector<16x512xf32>
    %9 = vector.shape_cast %6 : vector<16x512xf32> to vector<1x16x512xf32>
    tpu.vector_store %arg5[%c0_6, %c0_7, %c0_8], %9 {strides = array<i32>} : memref<1x16x512xf32, #tpu.memory_space<vmem>>, vector<1x16x512xf32>,
    return
  }
  func.func @transform_0(%arg0: i32, %arg1: i32) -> (i32, i32, i32) {
    %c0_i32 = arith.constant 0 : i32
    %c0_i32_0 = arith.constant 0 : i32
    return %arg0, %c0_i32, %arg1 : i32, i32, i32
  }
  func.func @transform_1(%arg0: i32, %arg1: i32) -> (i32, i32) {
    %c0_i32 = arith.constant 0 : i32
    %c0_i32_0 = arith.constant 0 : i32
    %c0_i32_1 = arith.constant 0 : i32
    return %c0_i32, %c0_i32_0 : i32, i32
  }
  func.func @transform_2(%arg0: i32, %arg1: i32) -> (i32, i32) {
    %c0_i32 = arith.constant 0 : i32
    %c0_i32_0 = arith.constant 0 : i32
    %c0_i32_1 = arith.constant 0 : i32
    return %c0_i32, %c0_i32_0 : i32, i32
  }
  func.func @transform_3(%arg0: i32, %arg1: i32) -> (i32, i32, i32) {
    %c0_i32 = arith.constant 0 : i32
    %c0_i32_0 = arith.constant 0 : i32
    return %arg0, %c0_i32, %arg1 : i32, i32, i32
  }
}

</mosaic_0001>

<llo_original>
// kernel: tpu_custom_call.1
$region0: #{tpu_custom_call.1}
  #allocation0 [shape = 'u32[]', space=smem, size = 0x4, offset = 0x4, fixed_abs, tag = 'smem constant byte address 0x4 - core index']
  #allocation1 [shape = 'u32[144,128]{1,0:T(1,128)}', space=vmem, size = 0x12000, scoped, tag = 'internal scratch']
  %s0 = inlined_call_operand.hbm [shape: f32[2,8,512], index: 0, kind: input, shape index: {}]
  %s1 = inlined_call_operand.vmem [shape: f32[16,8], index: 1, kind: input, shape index: {}]
  %s2 = inlined_call_operand.vmem [shape: f32[16,1], index: 2, kind: input, shape index: {}]
  %s3 = inlined_call_operand.hbm [shape: f32[2,16,512], index: 3, kind: output, shape index: {}]
  %s4 = sld [smem:[#allocation0]]
  $region49: #{tpu_custom_call.1} parent=0
    _
  %s6 = ssub.s32 1, %s4
  %s7 = scalar_select 0, %s6, %s4
  $region1: #{tpu_custom_call.1} parent=0
    #allocation2 [shape = 'u8[32768]{0}', space=vmem, size = 0x8000, scoped, tag = 'input window, operand 0']
    #allocation3 [shape = 's32[2]{0}', space=sflag, size = 0x8, scoped, tag = 'scoped memory for tpu_custom_call.1']
    #allocation4 [shape = 's32[2]{0}', space=sflag, size = 0x8, scoped, tag = 'scoped memory for tpu_custom_call.1']
    #allocation5 [shape = 'u8[65536]{0}', space=vmem, size = 0x10000, scoped, tag = 'output window, operand 0']
    %8 = vsyncpa [#allocation3], 0
    %s9 = scalar_lea.sflag [#allocation3], 1
    %10 = vsyncpa %s9, 0
    %11 = vsyncpa [#allocation4], 0
    %s12 = scalar_lea.sflag [#allocation4], 1
    %13 = vsyncpa %s12, 0
    loop: start=0, step=1, limit=4
    $region2: #{tpu_custom_call.1} parent=1 // loop_pre_header
      _
    $region3: #{tpu_custom_call.1} parent=1 // loop_header
      %s15 = sphi 0, %s19
      %p16 = scmp.ge.s32.totalorder %s15, 4
      %s22 = sphi 0, %s34
      %s23 = sphi 0, %s30
      %s24 = sphi 0, %s22
      %s25 = sphi 0, %s23
      %s26 = sphi 0, %s24
      %s27 = sphi 0, %s25
      %s39 = sphi 0, %s41
      %s42 = sphi 0, %s39
      %s43 = sphi 0, %s42
      %s59 = sphi 0, %s43
      %s63 = sphi 0, %s63
      %s65 = sphi 0, %s63
      %s66 = sphi 0, %s65
      %s80 = sphi 0, %s66
      %s84 = sphi 0, %s84
      %s86 = sphi 0, %s84
      %s87 = sphi 0, %s86
      %s101 = sphi 0, %s87
      %s109 = sphi 0, %s111
      %s112 = sphi 0, %s109
      %s113 = sphi 0, %s112
      %s129 = sphi 0, %s113
    $region4: #{tpu_custom_call.1} parent=1 // loop_header_branch
      %18 = sbr.rel (%p16) target = $region8
    $region5: #{tpu_custom_call.1} parent=1 // loop_body
      %s20 = ssub.s32 %s15, 1
      %s21 = ssub.s32 %s15, 2
      %s28 = sadd.s32 1, %s23
      %p29 = scmp.ge.s32.totalorder %s28, 1
      %s30 = scalar_select %p29, 0, %s28
      %s31 = sadd.s32 1, %s22
      %s32 = scalar_select %p29, %s31, %s22
      %p33 = scmp.ge.s32.totalorder %s32, 2
      %s34 = scalar_select %p33, 0, %s32
      %s35 = ssub.s32 %s22, %s34
      %s36 = ssub.s32 %s23, %s30
      %s37 = sor.u32 %s35, %s36
      %p38 = scmp.eq.s32.totalorder %s37, 0
      %s40 = sadd.s32 %s39, 1
      %s41 = scalar_select %p38, %s39, %s40
      %p44 = pneg %p38
      %p45 = scmp.eq.s32.totalorder %s15, 1
      %p46 = por %p44, %p45
      %p47 = scmp.ne.s32.totalorder %s39, %s42
      %p48 = scmp.eq.s32.totalorder %s15, 0
      %p49 = por %p47, %p48
      %p50 = scmp.ne.s32.totalorder %s39, %s42
      %p51 = scmp.eq.s32.totalorder %s20, 1
      %p52 = por %p50, %p51
      %p53 = scmp.ne.s32.totalorder %s42, %s43
      %p54 = scmp.eq.s32.totalorder %s20, 0
      %p55 = por %p53, %p54
      %p56 = scmp.ne.s32.totalorder %s42, %s43
      %p57 = scmp.eq.s32.totalorder %s21, 1
      %p58 = por %p56, %p57
      %p60 = scmp.ne.s32.totalorder %s43, %s59
      %p61 = scmp.eq.s32.totalorder %s21, 0
      %p62 = por %p60, %p61
      %s64 = sadd.s32 %s63, 1
      %p67 = scmp.eq.s32.totalorder %s15, 1
      %p68 = scmp.ne.s32.totalorder %s63, %s65
      %p69 = scmp.eq.s32.totalorder %s15, 0
      %p70 = por %p68, %p69
      %p71 = scmp.ne.s32.totalorder %s63, %s65
      %p72 = scmp.eq.s32.totalorder %s20, 1
      %p73 = por %p71, %p72
      %p74 = scmp.ne.s32.totalorder %s65, %s66
      %p75 = scmp.eq.s32.totalorder %s20, 0
      %p76 = por %p74, %p75
      %p77 = scmp.ne.s32.totalorder %s65, %s66
      %p78 = scmp.eq.s32.totalorder %s21, 1
      %p79 = por %p77, %p78
      %p81 = scmp.ne.s32.totalorder %s66, %s80
      %p82 = scmp.eq.s32.totalorder %s21, 0
      %p83 = por %p81, %p82
      %s85 = sadd.s32 %s84, 1
      %p88 = scmp.eq.s32.totalorder %s15, 1
      %p89 = scmp.ne.s32.totalorder %s84, %s86
      %p90 = scmp.eq.s32.totalorder %s15, 0
      %p91 = por %p89, %p90
      %p92 = scmp.ne.s32.totalorder %s84, %s86
      %p93 = scmp.eq.s32.totalorder %s20, 1
      %p94 = por %p92, %p93
      %p95 = scmp.ne.s32.totalorder %s86, %s87
      %p96 = scmp.eq.s32.totalorder %s20, 0
      %p97 = por %p95, %p96
      %p98 = scmp.ne.s32.totalorder %s86, %s87
      %p99 = scmp.eq.s32.totalorder %s21, 1
      %p100 = por %p98, %p99
      %p102 = scmp.ne.s32.totalorder %s87, %s101
      %p103 = scmp.eq.s32.totalorder %s21, 0
      %p104 = por %p102, %p103
      %s105 = ssub.s32 %s22, %s34
      %s106 = ssub.s32 %s23, %s30
      %s107 = sor.u32 %s105, %s106
      %p108 = scmp.eq.s32.totalorder %s107, 0
      %s110 = sadd.s32 %s109, 1
      %s111 = scalar_select %p108, %s109, %s110
      %p114 = pneg %p108
      %p115 = scmp.eq.s32.totalorder %s15, 1
      %p116 = por %p114, %p115
      %p117 = scmp.ne.s32.totalorder %s109, %s112
      %p118 = scmp.eq.s32.totalorder %s15, 0
      %p119 = por %p117, %p118
      %p120 = scmp.ne.s32.totalorder %s109, %s112
      %p121 = scmp.eq.s32.totalorder %s20, 1
      %p122 = por %p120, %p121
      %p123 = scmp.ne.s32.totalorder %s112, %s113
      %p124 = scmp.eq.s32.totalorder %s20, 0
      %p125 = por %p123, %p124
      %p126 = scmp.ne.s32.totalorder %s112, %s113
      %p127 = scmp.eq.s32.totalorder %s21, 1
      %p128 = por %p126, %p127
      %p130 = scmp.ne.s32.totalorder %s113, %s129
      %p131 = scmp.eq.s32.totalorder %s21, 0
      %p132 = por %p130, %p131
      %p133 = scmp.le.s32.totalorder 1, %s15
      %p134 = scmp.lt.s32.totalorder %s15, 3
      %p135 = pnand %p133, %p134
      %p136 = pneg %p135
      // Predicated region
      $region9: #{tpu_custom_call.1} parent=5 // pred_check
        _
      $region10: #{tpu_custom_call.1} parent=5 // pred_check_branch
        %138 = sbr.rel (%p135) target = $region12
      $region11: #{tpu_custom_call.1} parent=5 // pred_region
        %s139 = ssub.s32 %s15, 1
        // Predicated region
        $region13: #{tpu_custom_call.1} parent=11 // pred_check
          %p140 = pneg %p76
        $region14: #{tpu_custom_call.1} parent=11 // pred_check_branch
          %142 = sbr.rel (%p140) target = $region16
        $region15: #{tpu_custom_call.1} parent=11 // pred_region
          _
        $region16: #{tpu_custom_call.1} parent=11 // pred_fallthru
          _
        // Predicated region
        $region17: #{tpu_custom_call.1} parent=11 // pred_check
          %p143 = pneg %p97
        $region18: #{tpu_custom_call.1} parent=11 // pred_check_branch
          %145 = sbr.rel (%p143) target = $region20
        $region19: #{tpu_custom_call.1} parent=11 // pred_region
          _
        $region20: #{tpu_custom_call.1} parent=11 // pred_fallthru
          _
      $region12: #{tpu_custom_call.1} parent=5 // pred_fallthru
        _
      %p146 = scmp.lt.s32.totalorder %s15, 2
      // Predicated region
      $region21: #{tpu_custom_call.1} parent=5 // pred_check
        %p147 = pneg %p146
      $region22: #{tpu_custom_call.1} parent=5 // pred_check_branch
        %149 = sbr.rel (%p147) target = $region24
      $region23: #{tpu_custom_call.1} parent=5 // pred_region
        // Predicated region
        $region25: #{tpu_custom_call.1} parent=23 // pred_check
          %p150 = pneg %p49
        $region26: #{tpu_custom_call.1} parent=23 // pred_check_branch
          %152 = sbr.rel (%p150) target = $region28
        $region27: #{tpu_custom_call.1} parent=23 // pred_region
          %s153 = sand.u32 %s39, 1
          %s154 = scalar_lea.sflag [#allocation3], %s153
          %s155 = sand.u32 %s39, 1
          %s156 = smul.addr %s155, 32
          %s157 = scalar_lea.vmem [#allocation2], %s156
          %s158 = smul.u32 4, %s23
          %s160 = ssub.s32 512, 512
          %161 = vsyncadd %s154, %s160
          %s162 = smul.addr %s22, 4
          %s163 = sadd.s32 %s158, %s162
          %s164 = smul.addr %s163, 128
          %s165 = scalar_lea.hbm %s0, %s164
          %s167 = sshll.u32 %s157, 4
          %s168 = int_to_ptr.vmem [resolvable:$true] %s167
          %170 = dma.hbm_to_vmem [thread:$0]  %s165, 512, %s168, %s154
        $region28: #{tpu_custom_call.1} parent=23 // pred_fallthru
          _
      $region24: #{tpu_custom_call.1} parent=5 // pred_fallthru
        _
      %p171 = scmp.le.s32.totalorder 1, %s15
      %p172 = scmp.lt.s32.totalorder %s15, 3
      %p173 = pnand %p171, %p172
      %p174 = pneg %p173
      // Predicated region
      $region29: #{tpu_custom_call.1} parent=5 // pred_check
        _
      $region30: #{tpu_custom_call.1} parent=5 // pred_check_branch
        %176 = sbr.rel (%p173) target = $region32
      $region31: #{tpu_custom_call.1} parent=5 // pred_region
        %s177 = ssub.s32 %s15, 1
        %s178 = sand.u32 %s42, 1
        %s179 = scalar_lea.sflag [#allocation3], %s178
        %s180 = sand.u32 %s42, 1
        %s181 = smul.addr %s180, 32
        %s182 = scalar_lea.vmem [#allocation2], %s181
        // Predicated region
        $region33: #{tpu_custom_call.1} parent=31 // pred_check
          %p183 = pneg %p55
        $region34: #{tpu_custom_call.1} parent=31 // pred_check_branch
          %185 = sbr.rel (%p183) target = $region36
        $region35: #{tpu_custom_call.1} parent=31 // pred_region
          %186 = dma.done %s179, 512
        $region36: #{tpu_custom_call.1} parent=31 // pred_fallthru
          _
        %s187 = sand.u32 %s42, 1
        %s188 = scalar_lea.sflag [#allocation3], %s187
        %s189 = sand.u32 %s42, 1
        %s190 = smul.addr %s189, 32
        %s191 = scalar_lea.vmem [#allocation2], %s190
        %p192 = pneg %p55
        %p193 = pneg %p52
        %p194 = pneg %p76
        %p195 = pneg %p73
        %p196 = pneg %p97
        %p197 = pneg %p94
        %p198 = pneg %p125
        %p199 = pneg %p122
        %s200 = sand.u32 %s112, 1
        %s201 = scalar_lea.sflag [#allocation4], %s200
        %s202 = sand.u32 %s112, 1
        %s203 = smul.addr %s202, 64
        %s204 = scalar_lea.vmem [#allocation5], %s203
        %s205 = smul.u32 4, %s25
        %s206 = smul.u32 4, %s25
        %v207 = vld [vmem:[%s1] sm:$0xff]
        %v208 = vld [vmem:[%s1 + $0x8] sm:$0xff]
        %v209 = vld [vmem:[%s182] sm:$0xff]
        %v210 = vld [vmem:[%s182 + $0x8] sm:$0xff]
        %v211 = vld [vmem:[%s182 + $0x10] sm:$0xff]
        %v212 = vld [vmem:[%s182 + $0x18] sm:$0xff]
        %v213 = vld [vmem:[%s2] sm:$0xff]
        %v214 = vld [vmem:[%s2 + $0x8] sm:$0xff]
        %216 = vset.pattern.permute.xlu0 0
        %217 = vperm.xlu0 %216, %v213
        %v218 = vpop.permute.xlu0 %217
        %221 = vset.pattern.permute.xlu0 0
        %222 = vperm.xlu0 %221, %v214
        %v223 = vpop.permute.xlu0 %222
        %vm225 = vcmask 64512
        %v227 = vsel %vm225, %v207, 0
        %v230 = vsel %vm225, %v208, 0
        %232 = vmatprep.subr.mxu0 %v210
        %233 = vmatpush1.msra.mxu0 %v209
        %234 = vmatprep.subr.mxu0 0.0
        %235 = vmatpush1.msra.mxu0 0.0
        %236 = vmatprep.subr.mxu0 0.0
        %237 = vmatpush1.msra.mxu0 0.0
        %238 = vmatprep.subr.mxu0 0.0
        %239 = vmatpush1.msra.mxu0 0.0
        %240 = vmatprep.subr.mxu0 0.0
        %241 = vmatpush1.msra.mxu0 0.0
        %242 = vmatprep.subr.mxu0 0.0
        %243 = vmatpush1.msra.mxu0 0.0
        %244 = vmatprep.subr.mxu0 0.0
        %245 = vmatpush1.msra.mxu0 0.0
        %246 = vmatprep.subr.mxu0 0.0
        %247 = vmatpush1.msra.mxu0 0.0
        %248 = vmatprep.subr.mxu0 0.0
        %249 = vmatpush1.msra.mxu0 0.0
        %250 = vmatprep.subr.mxu0 0.0
        %251 = vmatpush1.msra.mxu0 0.0
        %252 = vmatprep.subr.mxu0 0.0
        %253 = vmatpush1.msra.mxu0 0.0
        %254 = vmatprep.subr.mxu0 0.0
        %255 = vmatpush1.msra.mxu0 0.0
        %256 = vmatprep.subr.mxu0 0.0
        %257 = vmatpush1.msra.mxu0 0.0
        %258 = vmatprep.subr.mxu0 0.0
        %259 = vmatpush1.msra.mxu0 0.0
        %260 = vmatprep.subr.mxu0 0.0
        %261 = vmatpush1.msra.mxu0 0.0
        %262 = vmatprep.subr.mxu0 0.0
        %263 = vmatpush1.msra.mxu0 0.0
        %264 = vmatprep.subr.mxu0 0.0
        %265 = vmatpush1.msra.mxu0 0.0
        %266 = vmatprep.subr.mxu0 0.0
        %267 = vmatpush1.msra.mxu0 0.0
        %268 = vmatprep.subr.mxu0 0.0
        %269 = vmatpush1.msra.mxu0 0.0
        %270 = vmatprep.subr.mxu0 0.0
        %271 = vmatpush1.msra.mxu0 0.0
        %272 = vmatprep.subr.mxu0 0.0
        %273 = vmatpush1.msra.mxu0 0.0
        %274 = vmatprep.subr.mxu0 0.0
        %275 = vmatpush1.msra.mxu0 0.0
        %276 = vmatprep.subr.mxu0 0.0
        %277 = vmatpush1.msra.mxu0 0.0
        %278 = vmatprep.subr.mxu0 0.0
        %279 = vmatpush1.msra.mxu0 0.0
        %280 = vmatprep.subr.mxu0 0.0
        %281 = vmatpush1.msra.mxu0 0.0
        %282 = vmatprep.subr.mxu0 0.0
        %283 = vmatpush1.msra.mxu0 0.0
        %284 = vmatprep.subr.mxu0 0.0
        %285 = vmatpush1.msra.mxu0 0.0
        %286 = vmatprep.subr.mxu0 0.0
        %287 = vmatpush1.msra.mxu0 0.0
        %288 = vmatprep.subr.mxu0 0.0
        %289 = vmatpush1.msra.mxu0 0.0
        %290 = vmatprep.subr.mxu0 0.0
        %291 = vmatpush1.msra.mxu0 0.0
        %292 = vmatprep.subr.mxu0 0.0
        %293 = vmatpush1.msra.mxu0 0.0
        %294 = vmatprep.subr.mxu0 0.0
        %295 = vmatpush1.msra.mxu0 0.0
        %296 = vmatprep.mubr.f32.mxu0 0.0
        %297 = vmatmul.mubr.f32.gmra.mrb[0].mxu0 %v227
        %v298 = vpop.f32.mrb[0].mxu0
        %v299 = vadd.f32 %v218, %v298
        %v300 = vpop.f32.mrb[0].mxu0
        %v301 = vadd.f32 %v218, %v300
        %302 = vmatprep.mubr.f32.mxu0 0.0
        %303 = vmatmul.mubr.f32.gmra.mrb[0].mxu0 %v230
        %v304 = vpop.f32.mrb[0].mxu0
        %v305 = vadd.f32 %v223, %v304
        %v306 = vpop.f32.mrb[0].mxu0
        %v307 = vadd.f32 %v223, %v306
        %308 = vdwg.mxu0
        %309 = vmatprep.subr.mxu0 %v212
        %310 = vmatpush1.msra.mxu0 %v211
        %311 = vmatprep.subr.mxu0 0.0
        %312 = vmatpush1.msra.mxu0 0.0
        %313 = vmatprep.subr.mxu0 0.0
        %314 = vmatpush1.msra.mxu0 0.0
        %315 = vmatprep.subr.mxu0 0.0
        %316 = vmatpush1.msra.mxu0 0.0
        %317 = vmatprep.subr.mxu0 0.0
        %318 = vmatpush1.msra.mxu0 0.0
        %319 = vmatprep.subr.mxu0 0.0
        %320 = vmatpush1.msra.mxu0 0.0
        %321 = vmatprep.subr.mxu0 0.0
        %322 = vmatpush1.msra.mxu0 0.0
        %323 = vmatprep.subr.mxu0 0.0
        %324 = vmatpush1.msra.mxu0 0.0
        %325 = vmatprep.subr.mxu0 0.0
        %326 = vmatpush1.msra.mxu0 0.0
        %327 = vmatprep.subr.mxu0 0.0
        %328 = vmatpush1.msra.mxu0 0.0
        %329 = vmatprep.subr.mxu0 0.0
        %330 = vmatpush1.msra.mxu0 0.0
        %331 = vmatprep.subr.mxu0 0.0
        %332 = vmatpush1.msra.mxu0 0.0
        %333 = vmatprep.subr.mxu0 0.0
        %334 = vmatpush1.msra.mxu0 0.0
        %335 = vmatprep.subr.mxu0 0.0
        %336 = vmatpush1.msra.mxu0 0.0
        %337 = vmatprep.subr.mxu0 0.0
        %338 = vmatpush1.msra.mxu0 0.0
        %339 = vmatprep.subr.mxu0 0.0
        %340 = vmatpush1.msra.mxu0 0.0
        %341 = vmatprep.subr.mxu0 0.0
        %342 = vmatpush1.msra.mxu0 0.0
        %343 = vmatprep.subr.mxu0 0.0
        %344 = vmatpush1.msra.mxu0 0.0
        %345 = vmatprep.subr.mxu0 0.0
        %346 = vmatpush1.msra.mxu0 0.0
        %347 = vmatprep.subr.mxu0 0.0
        %348 = vmatpush1.msra.mxu0 0.0
        %349 = vmatprep.subr.mxu0 0.0
        %350 = vmatpush1.msra.mxu0 0.0
        %351 = vmatprep.subr.mxu0 0.0
        %352 = vmatpush1.msra.mxu0 0.0
        %353 = vmatprep.subr.mxu0 0.0
        %354 = vmatpush1.msra.mxu0 0.0
        %355 = vmatprep.subr.mxu0 0.0
        %356 = vmatpush1.msra.mxu0 0.0
        %357 = vmatprep.subr.mxu0 0.0
        %358 = vmatpush1.msra.mxu0 0.0
        %359 = vmatprep.subr.mxu0 0.0
        %360 = vmatpush1.msra.mxu0 0.0
        %361 = vmatprep.subr.mxu0 0.0
        %362 = vmatpush1.msra.mxu0 0.0
        %363 = vmatprep.subr.mxu0 0.0
        %364 = vmatpush1.msra.mxu0 0.0
        %365 = vmatprep.subr.mxu0 0.0
        %366 = vmatpush1.msra.mxu0 0.0
        %367 = vmatprep.subr.mxu0 0.0
        %368 = vmatpush1.msra.mxu0 0.0
        %369 = vmatprep.subr.mxu0 0.0
        %370 = vmatpush1.msra.mxu0 0.0
        %371 = vmatprep.subr.mxu0 0.0
        %372 = vmatpush1.msra.mxu0 0.0
        %373 = vmatprep.mubr.f32.mxu0 0.0
        %374 = vmatmul.mubr.f32.gmra.mrb[0].mxu0 %v227
        %v375 = vpop.f32.mrb[0].mxu0
        %v376 = vadd.f32 %v218, %v375
        %v377 = vpop.f32.mrb[0].mxu0
        %v378 = vadd.f32 %v218, %v377
        %379 = vmatprep.mubr.f32.mxu0 0.0
        %380 = vmatmul.mubr.f32.gmra.mrb[0].mxu0 %v230
        %v381 = vpop.f32.mrb[0].mxu0
        %v382 = vadd.f32 %v223, %v381
        %v383 = vpop.f32.mrb[0].mxu0
        %v384 = vadd.f32 %v223, %v383
        %385 = vdwg.mxu0
        %386 = vst [vmem:[%s204] sm:$0xff] %v299
        %387 = vst [vmem:[%s204 + $0x8] sm:$0xff] %v301
        %388 = vst [vmem:[%s204 + $0x10] sm:$0xff] %v376
        %389 = vst [vmem:[%s204 + $0x18] sm:$0xff] %v378
        %390 = vst [vmem:[%s204 + $0x20] sm:$0xff] %v305
        %391 = vst [vmem:[%s204 + $0x28] sm:$0xff] %v307
        %392 = vst [vmem:[%s204 + $0x30] sm:$0xff] %v382
        %393 = vst [vmem:[%s204 + $0x38] sm:$0xff] %v384
        %s394 = sand.u32 %s112, 1
        %s395 = scalar_lea.sflag [#allocation4], %s394
        %s396 = sand.u32 %s112, 1
        %s397 = smul.addr %s396, 64
        %s398 = scalar_lea.vmem [#allocation5], %s397
        // Predicated region
        $region37: #{tpu_custom_call.1} parent=31 // pred_check
          %p399 = pneg %p122
        $region38: #{tpu_custom_call.1} parent=31 // pred_check_branch
          %401 = sbr.rel (%p399) target = $region40
        $region39: #{tpu_custom_call.1} parent=31 // pred_region
          %s402 = smul.u32 4, %s25
          %s404 = ssub.s32 1024, 1024
          %405 = vsyncadd %s395, %s404
          %s406 = smul.addr %s24, 8
          %s407 = sadd.s32 %s402, %s406
          %s408 = smul.addr %s407, 128
          %s409 = scalar_lea.hbm %s3, %s408
          %s410 = sshll.u32 %s398, 4
          %s411 = int_to_ptr.vmem [resolvable:$true] %s410
          %416 = dma.vmem_to_hbm [thread:$0]  %s411, 1024, %s409, %s395, 512, 512, 32
        $region40: #{tpu_custom_call.1} parent=31 // pred_fallthru
          _
      $region32: #{tpu_custom_call.1} parent=5 // pred_fallthru
        _
      %p417 = scmp.le.s32.totalorder 2, %s15
      // Predicated region
      $region41: #{tpu_custom_call.1} parent=5 // pred_check
        %p418 = pneg %p417
      $region42: #{tpu_custom_call.1} parent=5 // pred_check_branch
        %420 = sbr.rel (%p418) target = $region44
      $region43: #{tpu_custom_call.1} parent=5 // pred_region
        %s421 = ssub.s32 %s15, 2
        // Predicated region
        $region45: #{tpu_custom_call.1} parent=43 // pred_check
          %p422 = pneg %p128
        $region46: #{tpu_custom_call.1} parent=43 // pred_check_branch
          %424 = sbr.rel (%p422) target = $region48
        $region47: #{tpu_custom_call.1} parent=43 // pred_region
          %s425 = sand.u32 %s113, 1
          %s426 = scalar_lea.sflag [#allocation4], %s425
          %s427 = sand.u32 %s113, 1
          %s428 = smul.addr %s427, 64
          %s429 = scalar_lea.vmem [#allocation5], %s428
          %430 = dma.done %s426, 1024
        $region48: #{tpu_custom_call.1} parent=43 // pred_fallthru
          _
      $region44: #{tpu_custom_call.1} parent=5 // pred_fallthru
        _
    $region6: #{tpu_custom_call.1} parent=1 // loop_footer
      %s19 = sadd.s32 1, %s15
    $region7: #{tpu_custom_call.1} parent=1 // loop_footer_branch
      %14 = sbr.rel target = $region3
    $region8: #{tpu_custom_call.1} parent=1 // loop_exit
      _
    %431 = vsyncpa [#allocation3], 1
    %s432 = scalar_lea.sflag [#allocation3], 1
    %433 = vsyncpa %s432, 1
    %434 = vsyncpa [#allocation4], 1
    %s435 = scalar_lea.sflag [#allocation4], 1
    %436 = vsyncpa %s435, 1

</llo_original>
